<compile_context>
chip_gen: v7x
topology: tpu7x:2x2x1
jax: 0.10.0
libtpu: 0.0.40
codegen_flags: <defaults>
</compile_context>

<pallas_src>
import math

import jax
import jax.numpy as jnp
from jax import lax
from jax.experimental import pallas as pl
from jax.experimental.pallas import tpu as pltpu  # noqa: F401  (TPU backend)

# ---- model hyper-parameters (small, consistent with the module) -------------
VOCAB = 64
D_MODEL = 32
NUM_HEADS = 4
HEAD_DIM = D_MODEL // NUM_HEADS
D_FF = 4 * D_MODEL          # 128 == lane width -> FFN hidden is lane-dense
SEQ = 8
BATCH = 2
N_TOK = BATCH * SEQ          # 16 flattened tokens
LN_EPS = 1e-5
LANE = 128

# ---- parameter-slab row offsets (all rows are 128 lanes wide, f32) -----------
R_WQKV = 0      # 32 rows : [wq*scale | wk | wv | 0]          (32,128)
R_W1   = 32     # 32 rows : w1                                 (32,128)
R_W2T  = 64     # 32 rows : w2^T                               (32,128)
R_WO   = 96     # 32 rows : [wo | 0]                           (32,128)
R_WOUT = 128    # 32 rows : [wout | 0]                         (32,128)
R_EMB  = 160    # 64 rows : [emb*sqrt(d) | 0]                  (64,128)
R_POS  = 224    # 16 rows : [pos-enc tiled over batch | 0]     (16,128)
R_HM   = 240    # 64 rows : [head-expansion mask | 0]          (64,128)
R_NEG  = 304    # 16 rows : [batch block mask (0 / -1e30) | 0] (16,128)
R_BIAS = 320    # 16 rows : packed biases / LN params          (16,128)
R_TOTAL = 336


def _layernorm(x, g, b):
    mu = jnp.mean(x, axis=-1, keepdims=True)
    var = jnp.mean((x - mu) ** 2, axis=-1, keepdims=True)
    return (x - mu) * lax.rsqrt(var + LN_EPS) * g + b


# ----------------------------- Pallas kernel ---------------------------------
def _transformer_kernel(ids_ref, slab_ref, o_ref):
    # ---- embedding + positional encoding (in-kernel: one-hot @ emb) ----
    ids = ids_ref[...]                                          # (16, 1) int32
    tok = lax.broadcasted_iota(jnp.int32, (N_TOK, VOCAB), 1)    # (16, 64)
    onehot = (ids == tok).astype(jnp.float32)                   # (16, 64)
    emb = slab_ref[R_EMB:R_EMB + VOCAB, 0:D_MODEL]              # (64, 32), *sqrt(d) folded
    pos = slab_ref[R_POS:R_POS + N_TOK, 0:D_MODEL]              # (16, 32)
    x = jnp.dot(onehot, emb, preferred_element_type=jnp.float32) + pos

    # ---- packed biases / LN params ----
    bias = slab_ref[R_BIAS:R_BIAS + 16, :]                      # (16, 128)
    bqkv = bias[0:1, :]                                         # (1,128) zero-padded
    bo   = bias[1:2, 0:D_MODEL]
    ln1g = bias[2:3, 0:D_MODEL]
    ln1b = bias[3:4, 0:D_MODEL]
    b1   = bias[4:5, :]                                         # (1,128)
    b2   = bias[5:6, 0:D_MODEL]
    ln2g = bias[6:7, 0:D_MODEL]
    ln2b = bias[7:8, 0:D_MODEL]
    bout = bias[8:9, :]                                         # (1,128) zero-padded

    # ---- fused, lane-dense QKV projection (1/sqrt(head_dim) folded into Q) ----
    qkv = jnp.dot(x, slab_ref[R_WQKV:R_WQKV + D_MODEL, :],
                  preferred_element_type=jnp.float32) + bqkv    # (16, 128)
    q = qkv[:, 0:D_MODEL]
    k = qkv[:, D_MODEL:2 * D_MODEL]
    v = qkv[:, 2 * D_MODEL:3 * D_MODEL]

    # ---- fused 4-head self-attention: one score matmul + one masked softmax
    #      + one PV matmul + one denominator matmul (no per-head loop) ----
    hm  = slab_ref[R_HM:R_HM + NUM_HEADS * N_TOK, 0:D_MODEL]    # (64, 32) head mask
    neg = slab_ref[R_NEG:R_NEG + N_TOK, 0:NUM_HEADS * N_TOK]    # (16, 64) additive mask

    krep = jnp.concatenate([k, k, k, k], axis=0) * hm           # (64, 32)
    vrep = jnp.concatenate([v, v, v, v], axis=0) * hm           # (64, 32)

    # s[i, h*16+j] = q_h[i] . k_h[j]   (contract on last dims = q @ krep^T)
    s = lax.dot_general(q, krep, (((1,), (1,)), ((), ())),
                        preferred_element_type=jnp.float32)     # (16, 64)
    s = s + neg                                  # block-diagonal batch mask (finite)
    m = jnp.max(s, axis=-1, keepdims=True)       # shared row max (stability only)
    p = jnp.exp(s - m)                           # unnormalized probs; masked cols -> 0

    attn_u = jnp.dot(p, vrep, preferred_element_type=jnp.float32)  # (16, 32)
    denom  = jnp.dot(p, hm,   preferred_element_type=jnp.float32)  # per-head row sums
    r = pl.reciprocal(denom, approx=True)         # EUP
    r = r * (2.0 - denom * r)                     # one Newton step -> ~f32 accuracy
    attn = attn_u * r

    wo = slab_ref[R_WO:R_WO + D_MODEL, 0:D_MODEL]
    attn = jnp.dot(attn, wo, preferred_element_type=jnp.float32) + bo

    # ---- residual + LayerNorm 1 ----
    x1 = _layernorm(x + attn, ln1g, ln1b)

    # ---- feed-forward (ReLU), hidden is lane-dense (16, 128) ----
    h1 = jnp.maximum(
        jnp.dot(x1, slab_ref[R_W1:R_W1 + D_MODEL, :],
                preferred_element_type=jnp.float32) + b1, 0.0)
    ffn = lax.dot_general(h1, slab_ref[R_W2T:R_W2T + D_MODEL, :],
                          (((1,), (1,)), ((), ())),
                          preferred_element_type=jnp.float32) + b2   # (16, 32)

    # ---- residual + LayerNorm 2 ----
    x2 = _layernorm(x1 + ffn, ln2g, ln2b)

    # ---- output projection, lane-dense (16, 128) unmasked store ----
    o_ref[...] = jnp.dot(x2, slab_ref[R_WOUT:R_WOUT + D_MODEL, :],
                         preferred_element_type=jnp.float32) + bout


# ----------------------- parameter init & host-side prep ---------------------
def init_params(key):
    ks = jax.random.split(key, 8)
    s = 0.02
    return {
        "emb":  jax.random.normal(ks[0], (VOCAB, D_MODEL), jnp.float32) * s,
        "wq":   jax.random.normal(ks[1], (D_MODEL, D_MODEL), jnp.float32) * s,
        "bq":   jnp.zeros((1, D_MODEL), jnp.float32),
        "wk":   jax.random.normal(ks[2], (D_MODEL, D_MODEL), jnp.float32) * s,
        "bk":   jnp.zeros((1, D_MODEL), jnp.float32),
        "wv":   jax.random.normal(ks[3], (D_MODEL, D_MODEL), jnp.float32) * s,
        "bv":   jnp.zeros((1, D_MODEL), jnp.float32),
        "wo":   jax.random.normal(ks[4], (D_MODEL, D_MODEL), jnp.float32) * s,
        "bo":   jnp.zeros((1, D_MODEL), jnp.float32),
        "ln1g": jnp.ones((1, D_MODEL), jnp.float32),
        "ln1b": jnp.zeros((1, D_MODEL), jnp.float32),
        "w1":   jax.random.normal(ks[5], (D_MODEL, D_FF), jnp.float32) * s,
        "b1":   jnp.zeros((1, D_FF), jnp.float32),
        "w2":   jax.random.normal(ks[6], (D_FF, D_MODEL), jnp.float32) * s,
        "b2":   jnp.zeros((1, D_MODEL), jnp.float32),
        "ln2g": jnp.ones((1, D_MODEL), jnp.float32),
        "ln2b": jnp.zeros((1, D_MODEL), jnp.float32),
        "wout": jax.random.normal(ks[7], (D_MODEL, VOCAB), jnp.float32) * s,
        "bout": jnp.zeros((1, VOCAB), jnp.float32),
    }


def sinusoidal_positions(seq, d):
    pos = jnp.arange(seq, dtype=jnp.float32)[:, None]
    i = jnp.arange(d, dtype=jnp.float32)[None, :]
    angle = pos / jnp.power(10000.0, (2.0 * jnp.floor(i / 2.0)) / d)
    return jnp.where((jnp.arange(d) % 2) == 0, jnp.sin(angle), jnp.cos(angle))


def prepare_kernel_params(p):
    """Pack every weight / bias / constant into ONE lane-dense (336,128) slab."""
    scale = 1.0 / math.sqrt(HEAD_DIM)
    wqkv = jnp.concatenate([p["wq"] * scale, p["wk"], p["wv"]], axis=1)  # (32, 96)
    bqkv = jnp.concatenate([p["bq"] * scale, p["bk"], p["bv"]], axis=1)  # (1, 96)

    # constant head-expansion / selection mask:  hm[h*16+j, d] = (d // HEAD_DIM == h)
    hm = (jnp.arange(NUM_HEADS * N_TOK)[:, None] // N_TOK ==
          jnp.arange(D_MODEL)[None, :] // HEAD_DIM).astype(jnp.float32)   # (64, 32)

    # constant additive batch block mask, tiled per head:  (16, 64)
    same = (jnp.arange(N_TOK)[:, None] // SEQ) == (jnp.arange(N_TOK)[None, :] // SEQ)
    neg = jnp.tile(jnp.where(same, 0.0, -1e30).astype(jnp.float32), (1, NUM_HEADS))

    pos = jnp.tile(sinusoidal_positions(SEQ, D_MODEL), (BATCH, 1))        # (16, 32)

    slab = jnp.zeros((R_TOTAL, LANE), jnp.float32)
    slab = slab.at[R_WQKV:R_WQKV + D_MODEL, 0:3 * D_MODEL].set(wqkv)
    slab = slab.at[R_W1:R_W1 + D_MODEL, :].set(p["w1"])                   # (32,128)
    slab = slab.at[R_W2T:R_W2T + D_MODEL, :].set(p["w2"].T)               # (32,128)
    slab = slab.at[R_WO:R_WO + D_MODEL, 0:D_MODEL].set(p["wo"])
    slab = slab.at[R_WOUT:R_WOUT + D_MODEL, 0:VOCAB].set(p["wout"])
    slab = slab.at[R_EMB:R_EMB + VOCAB, 0:D_MODEL].set(p["emb"] * math.sqrt(D_MODEL))
    slab = slab.at[R_POS:R_POS + N_TOK, 0:D_MODEL].set(pos)
    slab = slab.at[R_HM:R_HM + NUM_HEADS * N_TOK, 0:D_MODEL].set(hm)
    slab = slab.at[R_NEG:R_NEG + N_TOK, 0:NUM_HEADS * N_TOK].set(neg)

    slab = slab.at[R_BIAS + 0, 0:3 * D_MODEL].set(bqkv[0])
    slab = slab.at[R_BIAS + 1, 0:D_MODEL].set(p["bo"][0])
    slab = slab.at[R_BIAS + 2, 0:D_MODEL].set(p["ln1g"][0])
    slab = slab.at[R_BIAS + 3, 0:D_MODEL].set(p["ln1b"][0])
    slab = slab.at[R_BIAS + 4, 0:D_FF].set(p["b1"][0])
    slab = slab.at[R_BIAS + 5, 0:D_MODEL].set(p["b2"][0])
    slab = slab.at[R_BIAS + 6, 0:D_MODEL].set(p["ln2g"][0])
    slab = slab.at[R_BIAS + 7, 0:D_MODEL].set(p["ln2b"][0])
    slab = slab.at[R_BIAS + 8, 0:VOCAB].set(p["bout"][0])
    return slab


# ------------------------------- wrapper --------------------------------------
@jax.jit
def custom_transformer(token_ids, slab):
    ids = token_ids.reshape(N_TOK, 1).astype(jnp.int32)
    logits = pl.pallas_call(
        _transformer_kernel,
        out_shape=jax.ShapeDtypeStruct((N_TOK, LANE), jnp.float32),
    )(ids, slab)
    return logits[:, :VOCAB].reshape(BATCH, SEQ, VOCAB)


# ------------------------------ reference (pure JAX) --------------------------
def reference_forward(x_emb, p):
    def dense(v, w, b):
        return v @ w + b
    q = dense(x_emb, p["wq"], p["bq"])
    k = dense(x_emb, p["wk"], p["bk"])
    v = dense(x_emb, p["wv"], p["bv"])
    B, S, D = x_emb.shape
    qh = q.reshape(B, S, NUM_HEADS, HEAD_DIM).transpose(0, 2, 1, 3)
    kh = k.reshape(B, S, NUM_HEADS, HEAD_DIM).transpose(0, 2, 1, 3)
    vh = v.reshape(B, S, NUM_HEADS, HEAD_DIM).transpose(0, 2, 1, 3)
    scores = jnp.einsum("bhqd,bhkd->bhqk", qh, kh) / math.sqrt(HEAD_DIM)
    p_attn = jax.nn.softmax(scores, axis=-1)
    attn = jnp.einsum("bhqk,bhkd->bhqd", p_attn, vh)
    attn = attn.transpose(0, 2, 1, 3).reshape(B, S, D)
    attn = dense(attn, p["wo"], p["bo"])
    x1 = _layernorm(x_emb + attn, p["ln1g"], p["ln1b"])
    ffn = dense(jnp.maximum(dense(x1, p["w1"], p["b1"]), 0.0), p["w2"], p["b2"])
    x2 = _layernorm(x1 + ffn, p["ln2g"], p["ln2b"])
    return dense(x2, p["wout"], p["bout"])


if __name__ == "__main__":
    key = jax.random.PRNGKey(0)
    pkey, tkey = jax.random.split(key)
    params = init_params(pkey)
    slab = prepare_kernel_params(params)

    token_ids = jax.random.randint(tkey, (BATCH, SEQ), 0, VOCAB, dtype=jnp.int32)

    logits = custom_transformer(token_ids, slab)
    logits = jax.block_until_ready(logits)
    assert logits.shape == (BATCH, SEQ, VOCAB), logits.shape

    # correctness check vs pure-JAX reference (original, unfused params)
    x = jnp.take(params["emb"], token_ids, axis=0)
    x = x * math.sqrt(D_MODEL) + sinusoidal_positions(SEQ, D_MODEL)
    ref = reference_forward(x.astype(jnp.float32), params)
    err = float(jnp.max(jnp.abs(logits - ref)))
    assert jnp.allclose(logits, ref, atol=1e-3, rtol=1e-3), err

    print("KERNEL_OK")
</pallas_src>

<mosaic_0001>
module attributes {stable_mosaic.version = 11 : i64} {
  func.func @_transformer_kernel(%arg0: memref<16x1xi32, #tpu.memory_space<vmem>>, %arg1: memref<336x128xf32, #tpu.memory_space<vmem>>, %arg2: memref<16x128xf32, #tpu.memory_space<vmem>>) attributes {dimension_semantics = [], scalar_prefetch = 0 : i64, scratch_operands = 0 : i64, tpu.core_type = #tpu.core_type<tc>} {
    %c0 = arith.constant 0 : index
    %c0_0 = arith.constant 0 : index
    %0 = vector.load %arg0[%c0, %c0_0] : memref<16x1xi32, #tpu.memory_space<vmem>>, vector<16x1xi32>
    %1 = tpu.iota {dimensions = array<i32: 1>} : vector<16x64xi32>
    %2 = vector.broadcast %0 : vector<16x1xi32> to vector<16x64xi32>
    %3 = arith.cmpi eq, %2, %1 : vector<16x64xi32>
    %4 = arith.extui %3 : vector<16x64xi1> to vector<16x64xi32>
    %5 = arith.sitofp %4 : vector<16x64xi32> to vector<16x64xf32>
    %c160 = arith.constant 160 : index
    %c0_1 = arith.constant 0 : index
    %6 = vector.load %arg1[%c160, %c0_1] : memref<336x128xf32, #tpu.memory_space<vmem>>, vector<64x32xf32>
    %c224 = arith.constant 224 : index
    %c0_2 = arith.constant 0 : index
    %7 = vector.load %arg1[%c224, %c0_2] : memref<336x128xf32, #tpu.memory_space<vmem>>, vector<16x32xf32>
    %cst = arith.constant dense<0.000000e+00> : vector<16x32xf32>
    %8 = tpu.matmul %5, %6, %cst {dimension_numbers = #tpu.dot_dimension_numbers<[1], [0], [0], [1], [0, 0, 1, 1], [], []>} : vector<16x64xf32>, vector<64x32xf32>, vector<16x32xf32> -> vector<16x32xf32>
    %9 = arith.addf %8, %7 : vector<16x32xf32>
    %c320 = arith.constant 320 : index
    %c0_3 = arith.constant 0 : index
    %10 = vector.load %arg1[%c320, %c0_3] : memref<336x128xf32, #tpu.memory_space<vmem>>, vector<16x128xf32>
    %11 = vector.extract_strided_slice %10 {offsets = [0, 0], sizes = [1, 128], strides = [1, 1]} : vector<16x128xf32> to vector<1x128xf32>
    %12 = vector.extract_strided_slice %10 {offsets = [1, 0], sizes = [1, 32], strides = [1, 1]} : vector<16x128xf32> to vector<1x32xf32>
    %13 = vector.extract_strided_slice %10 {offsets = [2, 0], sizes = [1, 32], strides = [1, 1]} : vector<16x128xf32> to vector<1x32xf32>
    %14 = vector.extract_strided_slice %10 {offsets = [3, 0], sizes = [1, 32], strides = [1, 1]} : vector<16x128xf32> to vector<1x32xf32>
    %15 = vector.extract_strided_slice %10 {offsets = [4, 0], sizes = [1, 128], strides = [1, 1]} : vector<16x128xf32> to vector<1x128xf32>
    %16 = vector.extract_strided_slice %10 {offsets = [5, 0], sizes = [1, 32], strides = [1, 1]} : vector<16x128xf32> to vector<1x32xf32>
    %17 = vector.extract_strided_slice %10 {offsets = [6, 0], sizes = [1, 32], strides = [1, 1]} : vector<16x128xf32> to vector<1x32xf32>
    %18 = vector.extract_strided_slice %10 {offsets = [7, 0], sizes = [1, 32], strides = [1, 1]} : vector<16x128xf32> to vector<1x32xf32>
    %19 = vector.extract_strided_slice %10 {offsets = [8, 0], sizes = [1, 128], strides = [1, 1]} : vector<16x128xf32> to vector<1x128xf32>
    %c0_4 = arith.constant 0 : index
    %c0_5 = arith.constant 0 : index
    %20 = vector.load %arg1[%c0_4, %c0_5] : memref<336x128xf32, #tpu.memory_space<vmem>>, vector<32x128xf32>
    %cst_6 = arith.constant dense<0.000000e+00> : vector<16x128xf32>
    %21 = tpu.matmul %9, %20, %cst_6 {dimension_numbers = #tpu.dot_dimension_numbers<[1], [0], [0], [1], [0, 0, 1, 1], [], []>} : vector<16x32xf32>, vector<32x128xf32>, vector<16x128xf32> -> vector<16x128xf32>
    %22 = vector.broadcast %11 : vector<1x128xf32> to vector<16x128xf32>
    %23 = arith.addf %21, %22 : vector<16x128xf32>
    %24 = vector.extract_strided_slice %23 {offsets = [0, 0], sizes = [16, 32], strides = [1, 1]} : vector<16x128xf32> to vector<16x32xf32>
    %25 = vector.extract_strided_slice %23 {offsets = [0, 32], sizes = [16, 32], strides = [1, 1]} : vector<16x128xf32> to vector<16x32xf32>
    %26 = vector.extract_strided_slice %23 {offsets = [0, 64], sizes = [16, 32], strides = [1, 1]} : vector<16x128xf32> to vector<16x32xf32>
    %c240 = arith.constant 240 : index
    %c0_7 = arith.constant 0 : index
    %27 = vector.load %arg1[%c240, %c0_7] : memref<336x128xf32, #tpu.memory_space<vmem>>, vector<64x32xf32>
    %c304 = arith.constant 304 : index
    %c0_8 = arith.constant 0 : index
    %28 = vector.load %arg1[%c304, %c0_8] : memref<336x128xf32, #tpu.memory_space<vmem>>, vector<16x64xf32>
    %29 = tpu.concatenate %25, %25, %25, %25 in 0 : vector<16x32xf32>, vector<16x32xf32>, vector<16x32xf32>, vector<16x32xf32> -> vector<64x32xf32>
    %30 = arith.mulf %29, %27 : vector<64x32xf32>
    %31 = tpu.concatenate %26, %26, %26, %26 in 0 : vector<16x32xf32>, vector<16x32xf32>, vector<16x32xf32>, vector<16x32xf32> -> vector<64x32xf32>
    %32 = arith.mulf %31, %27 : vector<64x32xf32>
    %cst_9 = arith.constant dense<0.000000e+00> : vector<16x64xf32>
    %33 = tpu.matmul %24, %30, %cst_9 {dimension_numbers = #tpu.dot_dimension_numbers<[1], [1], [0], [0], [0, 0, 1, 0], [], []>} : vector<16x32xf32>, vector<64x32xf32>, vector<16x64xf32> -> vector<16x64xf32>
    %34 = arith.addf %33, %28 : vector<16x64xf32>
    %cst_10 = arith.constant dense<0xFF800000> : vector<16xf32>
    %35 = vector.multi_reduction <maximumf>, %34, %cst_10 [1] : vector<16x64xf32> to vector<16xf32>
    %36 = vector.shape_cast %35 : vector<16xf32> to vector<16x1xf32>
    %37 = vector.broadcast %36 : vector<16x1xf32> to vector<16x64xf32>
    %38 = arith.subf %34, %37 : vector<16x64xf32>
    %39 = math.exp %38 : vector<16x64xf32>
    %cst_11 = arith.constant dense<0.000000e+00> : vector<16x32xf32>
    %40 = tpu.matmul %39, %32, %cst_11 {dimension_numbers = #tpu.dot_dimension_numbers<[1], [0], [0], [1], [0, 0, 1, 1], [], []>} : vector<16x64xf32>, vector<64x32xf32>, vector<16x32xf32> -> vector<16x32xf32>
    %cst_12 = arith.constant dense<0.000000e+00> : vector<16x32xf32>
    %41 = tpu.matmul %39, %27, %cst_12 {dimension_numbers = #tpu.dot_dimension_numbers<[1], [0], [0], [1], [0, 0, 1, 1], [], []>} : vector<16x64xf32>, vector<64x32xf32>, vector<16x32xf32> -> vector<16x32xf32>
    %42 = tpu.reciprocal %41 {approx = true} : vector<16x32xf32> -> vector<16x32xf32>
    %43 = arith.mulf %41, %42 : vector<16x32xf32>
    %cst_13 = arith.constant 2.000000e+00 : f32
    %44 = vector.broadcast %cst_13 : f32 to vector<16x32xf32>
    %45 = arith.subf %44, %43 : vector<16x32xf32>
    %46 = arith.mulf %42, %45 : vector<16x32xf32>
    %47 = arith.mulf %40, %46 : vector<16x32xf32>
    %c96 = arith.constant 96 : index
    %c0_14 = arith.constant 0 : index
    %48 = vector.load %arg1[%c96, %c0_14] : memref<336x128xf32, #tpu.memory_space<vmem>>, vector<32x32xf32>
    %cst_15 = arith.constant dense<0.000000e+00> : vector<16x32xf32>
    %49 = tpu.matmul %47, %48, %cst_15 {dimension_numbers = #tpu.dot_dimension_numbers<[1], [0], [0], [1], [0, 0, 1, 1], [], []>} : vector<16x32xf32>, vector<32x32xf32>, vector<16x32xf32> -> vector<16x32xf32>
    %50 = vector.broadcast %12 : vector<1x32xf32> to vector<16x32xf32>
    %51 = arith.addf %49, %50 : vector<16x32xf32>
    %52 = arith.addf %9, %51 : vector<16x32xf32>
    %cst_16 = arith.constant dense<0.000000e+00> : vector<16xf32>
    %53 = vector.multi_reduction <add>, %52, %cst_16 [1] : vector<16x32xf32> to vector<16xf32>
    %54 = vector.shape_cast %53 : vector<16xf32> to vector<16x1xf32>
    %cst_17 = arith.constant 3.200000e+01 : f32
    %55 = vector.broadcast %cst_17 : f32 to vector<16x1xf32>
    %56 = arith.divf %54, %55 : vector<16x1xf32>
    %57 = vector.broadcast %56 : vector<16x1xf32> to vector<16x32xf32>
    %58 = arith.subf %52, %57 : vector<16x32xf32>
    %59 = arith.mulf %58, %58 : vector<16x32xf32>
    %cst_18 = arith.constant dense<0.000000e+00> : vector<16xf32>
    %60 = vector.multi_reduction <add>, %59, %cst_18 [1] : vector<16x32xf32> to vector<16xf32>
    %61 = vector.shape_cast %60 : vector<16xf32> to vector<16x1xf32>
    %cst_19 = arith.constant 3.200000e+01 : f32
    %62 = vector.broadcast %cst_19 : f32 to vector<16x1xf32>
    %63 = arith.divf %61, %62 : vector<16x1xf32>
    %64 = vector.broadcast %56 : vector<16x1xf32> to vector<16x32xf32>
    %65 = arith.subf %52, %64 : vector<16x32xf32>
    %cst_20 = arith.constant 9.99999974E-6 : f32
    %66 = vector.broadcast %cst_20 : f32 to vector<16x1xf32>
    %67 = arith.addf %63, %66 : vector<16x1xf32>
    %68 = math.rsqrt %67 : vector<16x1xf32>
    %69 = vector.broadcast %68 : vector<16x1xf32> to vector<16x32xf32>
    %70 = arith.mulf %65, %69 : vector<16x32xf32>
    %71 = vector.broadcast %13 : vector<1x32xf32> to vector<16x32xf32>
    %72 = arith.mulf %70, %71 : vector<16x32xf32>
    %73 = vector.broadcast %14 : vector<1x32xf32> to vector<16x32xf32>
    %74 = arith.addf %72, %73 : vector<16x32xf32>
    %c32 = arith.constant 32 : index
    %c0_21 = arith.constant 0 : index
    %75 = vector.load %arg1[%c32, %c0_21] : memref<336x128xf32, #tpu.memory_space<vmem>>, vector<32x128xf32>
    %cst_22 = arith.constant dense<0.000000e+00> : vector<16x128xf32>
    %76 = tpu.matmul %74, %75, %cst_22 {dimension_numbers = #tpu.dot_dimension_numbers<[1], [0], [0], [1], [0, 0, 1, 1], [], []>} : vector<16x32xf32>, vector<32x128xf32>, vector<16x128xf32> -> vector<16x128xf32>
    %77 = vector.broadcast %15 : vector<1x128xf32> to vector<16x128xf32>
    %78 = arith.addf %76, %77 : vector<16x128xf32>
    %cst_23 = arith.constant 0.000000e+00 : f32
    %79 = vector.broadcast %cst_23 : f32 to vector<16x128xf32>
    %80 = arith.maximumf %78, %79 : vector<16x128xf32>
    %c64 = arith.constant 64 : index
    %c0_24 = arith.constant 0 : index
    %81 = vector.load %arg1[%c64, %c0_24] : memref<336x128xf32, #tpu.memory_space<vmem>>, vector<32x128xf32>
    %cst_25 = arith.constant dense<0.000000e+00> : vector<16x32xf32>
    %82 = tpu.matmul %80, %81, %cst_25 {dimension_numbers = #tpu.dot_dimension_numbers<[1], [1], [0], [0], [0, 0, 1, 0], [], []>} : vector<16x128xf32>, vector<32x128xf32>, vector<16x32xf32> -> vector<16x32xf32>
    %83 = vector.broadcast %16 : vector<1x32xf32> to vector<16x32xf32>
    %84 = arith.addf %82, %83 : vector<16x32xf32>
    %85 = arith.addf %74, %84 : vector<16x32xf32>
    %cst_26 = arith.constant dense<0.000000e+00> : vector<16xf32>
    %86 = vector.multi_reduction <add>, %85, %cst_26 [1] : vector<16x32xf32> to vector<16xf32>
    %87 = vector.shape_cast %86 : vector<16xf32> to vector<16x1xf32>
    %cst_27 = arith.constant 3.200000e+01 : f32
    %88 = vector.broadcast %cst_27 : f32 to vector<16x1xf32>
    %89 = arith.divf %87, %88 : vector<16x1xf32>
    %90 = vector.broadcast %89 : vector<16x1xf32> to vector<16x32xf32>
    %91 = arith.subf %85, %90 : vector<16x32xf32>
    %92 = arith.mulf %91, %91 : vector<16x32xf32>
    %cst_28 = arith.constant dense<0.000000e+00> : vector<16xf32>
    %93 = vector.multi_reduction <add>, %92, %cst_28 [1] : vector<16x32xf32> to vector<16xf32>
    %94 = vector.shape_cast %93 : vector<16xf32> to vector<16x1xf32>
    %cst_29 = arith.constant 3.200000e+01 : f32
    %95 = vector.broadcast %cst_29 : f32 to vector<16x1xf32>
    %96 = arith.divf %94, %95 : vector<16x1xf32>
    %97 = vector.broadcast %89 : vector<16x1xf32> to vector<16x32xf32>
    %98 = arith.subf %85, %97 : vector<16x32xf32>
    %cst_30 = arith.constant 9.99999974E-6 : f32
    %99 = vector.broadcast %cst_30 : f32 to vector<16x1xf32>
    %100 = arith.addf %96, %99 : vector<16x1xf32>
    %101 = math.rsqrt %100 : vector<16x1xf32>
    %102 = vector.broadcast %101 : vector<16x1xf32> to vector<16x32xf32>
    %103 = arith.mulf %98, %102 : vector<16x32xf32>
    %104 = vector.broadcast %17 : vector<1x32xf32> to vector<16x32xf32>
    %105 = arith.mulf %103, %104 : vector<16x32xf32>
    %106 = vector.broadcast %18 : vector<1x32xf32> to vector<16x32xf32>
    %107 = arith.addf %105, %106 : vector<16x32xf32>
    %c128 = arith.constant 128 : index
    %c0_31 = arith.constant 0 : index
    %108 = vector.load %arg1[%c128, %c0_31] : memref<336x128xf32, #tpu.memory_space<vmem>>, vector<32x128xf32>
    %cst_32 = arith.constant dense<0.000000e+00> : vector<16x128xf32>
    %109 = tpu.matmul %107, %108, %cst_32 {dimension_numbers = #tpu.dot_dimension_numbers<[1], [0], [0], [1], [0, 0, 1, 1], [], []>} : vector<16x32xf32>, vector<32x128xf32>, vector<16x128xf32> -> vector<16x128xf32>
    %110 = vector.broadcast %19 : vector<1x128xf32> to vector<16x128xf32>
    %111 = arith.addf %109, %110 : vector<16x128xf32>
    %c0_33 = arith.constant 0 : index
    %c0_34 = arith.constant 0 : index
    %112 = vector.load %arg2[%c0_33, %c0_34] : memref<16x128xf32, #tpu.memory_space<vmem>>, vector<16x128xf32>
    tpu.vector_store %arg2[%c0_33, %c0_34], %111 {strides = array<i32>} : memref<16x128xf32, #tpu.memory_space<vmem>>, vector<16x128xf32>,
    return
  }
}

</mosaic_0001>

<llo_original>
// kernel: custom_transformer.1
$region0: #{custom_transformer.1}
  #allocation0 [shape = 'u32[]', space=smem, size = 0x4, offset = 0x4, fixed_abs, tag = 'smem constant byte address 0x4 - core index']
  #allocation1 [shape = 'u32[144,128]{1,0:T(1,128)}', space=vmem, size = 0x12000, scoped, tag = 'internal scratch']
  %s0 = inlined_call_operand.vmem [shape: s32[16,1], index: 0, kind: input, shape index: {}]
  %s1 = inlined_call_operand.hbm [shape: f32[336,128], index: 1, kind: input, shape index: {}]
  %s2 = inlined_call_operand.vmem [shape: f32[16,128], index: 2, kind: output, shape index: {}]
  %s3 = sld [smem:[#allocation0]]
  $region22: #{custom_transformer.1} parent=0
    _
  %s5 = ssub.s32 1, %s3
  %s6 = scalar_select 0, %s5, %s3
  $region1: #{custom_transformer.1} parent=0
    #allocation2 [shape = 'u8[172032]{0}', space=vmem, size = 0x2a000, scoped, tag = 'input window, operand 1, single buffered']
    #allocation3 [shape = 's32[1]{0}', space=sflag, size = 0x4, scoped, tag = 'scoped memory for custom_transformer.1']
    %7 = vsyncpa [#allocation3], 0
    // Predicated region
    $region2: #{custom_transformer.1} parent=1 // pred_check
      _
    $region3: #{custom_transformer.1} parent=1 // pred_check_branch
      %9 = sbr.rel (0) target = $region5
    $region4: #{custom_transformer.1} parent=1 // pred_region
      _
    $region5: #{custom_transformer.1} parent=1 // pred_fallthru
      _
    // Predicated region
    $region6: #{custom_transformer.1} parent=1 // pred_check
      _
    $region7: #{custom_transformer.1} parent=1 // pred_check_branch
      %11 = sbr.rel (0) target = $region9
    $region8: #{custom_transformer.1} parent=1 // pred_region
      %s13 = ssub.s32 5376, 5376
      %14 = vsyncadd [#allocation3], %s13
      %s15 = sshll.u32 [#allocation2], 4
      %s16 = int_to_ptr.vmem [resolvable:$true] %s15
      %21 = dma.hbm_to_vmem [thread:$0]  %s1, 5376, %s16, [#allocation3], 128, 128, 8
    $region9: #{custom_transformer.1} parent=1 // pred_fallthru
      _
    // Predicated region
    $region10: #{custom_transformer.1} parent=1 // pred_check
      _
    $region11: #{custom_transformer.1} parent=1 // pred_check_branch
      %23 = sbr.rel (0) target = $region13
    $region12: #{custom_transformer.1} parent=1 // pred_region
      %24 = dma.done [#allocation3], 5376
    $region13: #{custom_transformer.1} parent=1 // pred_fallthru
      _
    %v25 = vld [vmem:[%s0] sm:$0xff]
    %v26 = vld [vmem:[%s0 + $0x8] sm:$0xff]
    %v27 = vlaneseq
    %v28 = vand.u32 %v27, 127
    %29 = vset.pattern.permute.xlu0 0
    %30 = vperm.xlu0 %29, %v25
    %v31 = vpop.permute.xlu0 %30
    %32 = vset.pattern.permute.xlu0 0
    %33 = vperm.xlu0 %32, %v26
    %v34 = vpop.permute.xlu0 %33
    %vm35 = vcmp.eq.s32.totalorder %v31, %v28
    %vm36 = vcmp.eq.s32.totalorder %v34, %v28
    %v37 = vsel %vm35, 1, 0
    %v38 = vsel %vm36, 1, 0
    %v39 = vcvt.s32.f32 %v37
    %v40 = vcvt.s32.f32 %v38
    %v41 = vld [vmem:[#allocation2 + $0xa0] sm:$0xff]
    %v42 = vld [vmem:[#allocation2 + $0xa8] sm:$0xff]
    %v43 = vld [vmem:[#allocation2 + $0xb0] sm:$0xff]
    %v44 = vld [vmem:[#allocation2 + $0xb8] sm:$0xff]
    %v45 = vld [vmem:[#allocation2 + $0xc0] sm:$0xff]
    %v46 = vld [vmem:[#allocation2 + $0xc8] sm:$0xff]
    %v47 = vld [vmem:[#allocation2 + $0xd0] sm:$0xff]
    %v48 = vld [vmem:[#allocation2 + $0xd8] sm:$0xff]
    %v49 = vld [vmem:[#allocation2 + $0xe0] sm:$0xff]
    %v50 = vld [vmem:[#allocation2 + $0xe8] sm:$0xff]
    %vm51 = vcmask 523264
    %v53 = vsel %vm51, %v39, 0
    %v56 = vsel %vm51, %v40, 0
    %58 = vmatprep.subr.mxu0 0.0
    %59 = vmatpush1.msra.mxu0 %v41
    %60 = vmatprep.subr.mxu0 0.0
    %61 = vmatpush1.msra.mxu0 %v42
    %62 = vmatprep.subr.mxu0 0.0
    %63 = vmatpush1.msra.mxu0 %v43
    %64 = vmatprep.subr.mxu0 0.0
    %65 = vmatpush1.msra.mxu0 %v44
    %66 = vmatprep.subr.mxu0 0.0
    %67 = vmatpush1.msra.mxu0 %v45
    %68 = vmatprep.subr.mxu0 0.0
    %69 = vmatpush1.msra.mxu0 %v46
    %70 = vmatprep.subr.mxu0 0.0
    %71 = vmatpush1.msra.mxu0 %v47
    %72 = vmatprep.subr.mxu0 0.0
    %73 = vmatpush1.msra.mxu0 %v48
    %74 = vmatprep.subr.mxu0 0.0
    %75 = vmatpush1.msra.mxu0 0.0
    %76 = vmatprep.subr.mxu0 0.0
    %77 = vmatpush1.msra.mxu0 0.0
    %78 = vmatprep.subr.mxu0 0.0
    %79 = vmatpush1.msra.mxu0 0.0
    %80 = vmatprep.subr.mxu0 0.0
    %81 = vmatpush1.msra.mxu0 0.0
    %82 = vmatprep.subr.mxu0 0.0
    %83 = vmatpush1.msra.mxu0 0.0
    %84 = vmatprep.subr.mxu0 0.0
    %85 = vmatpush1.msra.mxu0 0.0
    %86 = vmatprep.subr.mxu0 0.0
    %87 = vmatpush1.msra.mxu0 0.0
    %88 = vmatprep.subr.mxu0 0.0
    %89 = vmatpush1.msra.mxu0 0.0
    %90 = vmatprep.subr.mxu0 0.0
    %91 = vmatpush1.msra.mxu0 0.0
    %92 = vmatprep.subr.mxu0 0.0
    %93 = vmatpush1.msra.mxu0 0.0
    %94 = vmatprep.subr.mxu0 0.0
    %95 = vmatpush1.msra.mxu0 0.0
    %96 = vmatprep.subr.mxu0 0.0
    %97 = vmatpush1.msra.mxu0 0.0
    %98 = vmatprep.subr.mxu0 0.0
    %99 = vmatpush1.msra.mxu0 0.0
    %100 = vmatprep.subr.mxu0 0.0
    %101 = vmatpush1.msra.mxu0 0.0
    %102 = vmatprep.subr.mxu0 0.0
    %103 = vmatpush1.msra.mxu0 0.0
    %104 = vmatprep.subr.mxu0 0.0
    %105 = vmatpush1.msra.mxu0 0.0
    %106 = vmatprep.subr.mxu0 0.0
    %107 = vmatpush1.msra.mxu0 0.0
    %108 = vmatprep.subr.mxu0 0.0
    %109 = vmatpush1.msra.mxu0 0.0
    %110 = vmatprep.subr.mxu0 0.0
    %111 = vmatpush1.msra.mxu0 0.0
    %112 = vmatprep.subr.mxu0 0.0
    %113 = vmatpush1.msra.mxu0 0.0
    %114 = vmatprep.subr.mxu0 0.0
    %115 = vmatpush1.msra.mxu0 0.0
    %116 = vmatprep.subr.mxu0 0.0
    %117 = vmatpush1.msra.mxu0 0.0
    %118 = vmatprep.subr.mxu0 0.0
    %119 = vmatpush1.msra.mxu0 0.0
    %120 = vmatprep.subr.mxu0 0.0
    %121 = vmatpush1.msra.mxu0 0.0
    %122 = vmatprep.mubr.f32.mxu0 0.0
    %123 = vmatmul.mubr.f32.gmra.mrb[0].mxu0 %v53
    %v124 = vpop.f32.mrb[0].mxu0
    %v125 = vadd.f32 %v49, %v124
    %v126 = vpop.f32.mrb[0].mxu0
    %127 = vmatprep.mubr.f32.mxu0 0.0
    %128 = vmatmul.mubr.f32.gmra.mrb[0].mxu0 %v56
    %v129 = vpop.f32.mrb[0].mxu0
    %v130 = vadd.f32 %v50, %v129
    %v131 = vpop.f32.mrb[0].mxu0
    %132 = vdwg.mxu0
    %v133 = vld [vmem:[#allocation2 + $0x140] sm:$0xff]
    %v134 = vld [vmem:[#allocation2 + $0x148] sm:$0xff]
    %v135 = vld [vmem:[#allocation2] sm:$0xff]
    %v136 = vld [vmem:[#allocation2 + $0x8] sm:$0xff]
    %v137 = vld [vmem:[#allocation2 + $0x10] sm:$0xff]
    %v138 = vld [vmem:[#allocation2 + $0x18] sm:$0xff]
    %v139 = vlaneseq
    %v140 = vshrl.u32 %v139, 7
    %v141 = vsub.s32 0, %v140
    %v142 = vrot.slane %v133, %v141
    %vm143 = vcmask 261120
    %v145 = vsel %vm143, %v125, 0
    %v148 = vsel %vm143, %v130, 0
    %150 = vmatprep.subr.mxu0 0.0
    %151 = vmatpush1.msra.mxu0 %v135
    %152 = vmatprep.subr.mxu0 0.0
    %153 = vmatpush1.msra.mxu0 %v136
    %154 = vmatprep.subr.mxu0 0.0
    %155 = vmatpush1.msra.mxu0 %v137
    %156 = vmatprep.subr.mxu0 0.0
    %157 = vmatpush1.msra.mxu0 %v138
    %158 = vmatprep.subr.mxu0 0.0
    %159 = vmatpush1.msra.mxu0 0.0
    %160 = vmatprep.subr.mxu0 0.0
    %161 = vmatpush1.msra.mxu0 0.0
    %162 = vmatprep.subr.mxu0 0.0
    %163 = vmatpush1.msra.mxu0 0.0
    %164 = vmatprep.subr.mxu0 0.0
    %165 = vmatpush1.msra.mxu0 0.0
    %166 = vmatprep.subr.mxu0 0.0
    %167 = vmatpush1.msra.mxu0 0.0
    %168 = vmatprep.subr.mxu0 0.0
    %169 = vmatpush1.msra.mxu0 0.0
    %170 = vmatprep.subr.mxu0 0.0
    %171 = vmatpush1.msra.mxu0 0.0
    %172 = vmatprep.subr.mxu0 0.0
    %173 = vmatpush1.msra.mxu0 0.0
    %174 = vmatprep.subr.mxu0 0.0
    %175 = vmatpush1.msra.mxu0 0.0
    %176 = vmatprep.subr.mxu0 0.0
    %177 = vmatpush1.msra.mxu0 0.0
    %178 = vmatprep.subr.mxu0 0.0
    %179 = vmatpush1.msra.mxu0 0.0
    %180 = vmatprep.subr.mxu0 0.0
    %181 = vmatpush1.msra.mxu0 0.0
    %182 = vmatprep.subr.mxu0 0.0
    %183 = vmatpush1.msra.mxu0 0.0
    %184 = vmatprep.subr.mxu0 0.0
    %185 = vmatpush1.msra.mxu0 0.0
    %186 = vmatprep.subr.mxu0 0.0
    %187 = vmatpush1.msra.mxu0 0.0
    %188 = vmatprep.subr.mxu0 0.0
    %189 = vmatpush1.msra.mxu0 0.0
    %190 = vmatprep.subr.mxu0 0.0
    %191 = vmatpush1.msra.mxu0 0.0
    %192 = vmatprep.subr.mxu0 0.0
    %193 = vmatpush1.msra.mxu0 0.0
    %194 = vmatprep.subr.mxu0 0.0
    %195 = vmatpush1.msra.mxu0 0.0
    %196 = vmatprep.subr.mxu0 0.0
    %197 = vmatpush1.msra.mxu0 0.0
    %198 = vmatprep.subr.mxu0 0.0
    %199 = vmatpush1.msra.mxu0 0.0
    %200 = vmatprep.subr.mxu0 0.0
    %201 = vmatpush1.msra.mxu0 0.0
    %202 = vmatprep.subr.mxu0 0.0
    %203 = vmatpush1.msra.mxu0 0.0
    %204 = vmatprep.subr.mxu0 0.0
    %205 = vmatpush1.msra.mxu0 0.0
    %206 = vmatprep.subr.mxu0 0.0
    %207 = vmatpush1.msra.mxu0 0.0
    %208 = vmatprep.subr.mxu0 0.0
    %209 = vmatpush1.msra.mxu0 0.0
    %210 = vmatprep.subr.mxu0 0.0
    %211 = vmatpush1.msra.mxu0 0.0
    %212 = vmatprep.subr.mxu0 0.0
    %213 = vmatpush1.msra.mxu0 0.0
    %214 = vmatprep.mubr.f32.mxu0 0.0
    %215 = vmatmul.mubr.f32.gmra.mrb[0].mxu0 %v145
    %v216 = vpop.f32.mrb[0].mxu0
    %v217 = vadd.f32 %v142, %v216
    %v218 = vpop.f32.mrb[0].mxu0
    %219 = vmatprep.mubr.f32.mxu0 0.0
    %220 = vmatmul.mubr.f32.gmra.mrb[0].mxu0 %v148
    %v221 = vpop.f32.mrb[0].mxu0
    %v222 = vadd.f32 %v142, %v221
    %v223 = vpop.f32.mrb[0].mxu0
    %224 = vdwg.mxu0
    %v225 = vld [vmem:[#allocation2 + $0xf0] sm:$0xff]
    %v226 = vld [vmem:[#allocation2 + $0xf8] sm:$0xff]
    %v227 = vld [vmem:[#allocation2 + $0x100] sm:$0xff]
    %v228 = vld [vmem:[#allocation2 + $0x108] sm:$0xff]
    %v229 = vld [vmem:[#allocation2 + $0x110] sm:$0xff]
    %v230 = vld [vmem:[#allocation2 + $0x118] sm:$0xff]
    %v231 = vld [vmem:[#allocation2 + $0x120] sm:$0xff]
    %v232 = vld [vmem:[#allocation2 + $0x128] sm:$0xff]
    %v233 = vld [vmem:[#allocation2 + $0x130] sm:$0xff]
    %v234 = vld [vmem:[#allocation2 + $0x138] sm:$0xff]
    %243 = vrot.lane.b32.xlu0 %v225, 32
    %v244 = vpop.permute.xlu0 %243
    %245 = vrot.lane.b32.xlu0 %v226, 32
    %v246 = vpop.permute.xlu0 %245
    %247 = vrot.lane.b32.xlu0 %v227, 32
    %v248 = vpop.permute.xlu0 %247
    %249 = vrot.lane.b32.xlu0 %v228, 32
    %v250 = vpop.permute.xlu0 %249
    %251 = vrot.lane.b32.xlu0 %v229, 32
    %v252 = vpop.permute.xlu0 %251
    %253 = vrot.lane.b32.xlu0 %v230, 32
    %v254 = vpop.permute.xlu0 %253
    %255 = vrot.lane.b32.xlu0 %v231, 32
    %v256 = vpop.permute.xlu0 %255
    %257 = vrot.lane.b32.xlu0 %v232, 32
    %v258 = vpop.permute.xlu0 %257
    %v267 = vmul.f32 %v217, %v244
    %v268 = vmul.f32 %v222, %v246
    %v269 = vmul.f32 %v217, %v248
    %v270 = vmul.f32 %v222, %v250
    %v271 = vmul.f32 %v217, %v252
    %v272 = vmul.f32 %v222, %v254
    %v273 = vmul.f32 %v217, %v256
    %v274 = vmul.f32 %v222, %v258
    %275 = vrot.lane.b32.xlu0 %v225, 64
    %v276 = vpop.permute.xlu0 %275
    %277 = vrot.lane.b32.xlu0 %v226, 64
    %v278 = vpop.permute.xlu0 %277
    %279 = vrot.lane.b32.xlu0 %v227, 64
    %v280 = vpop.permute.xlu0 %279
    %281 = vrot.lane.b32.xlu0 %v228, 64
    %v282 = vpop.permute.xlu0 %281
    %283 = vrot.lane.b32.xlu0 %v229, 64
    %v284 = vpop.permute.xlu0 %283
    %285 = vrot.lane.b32.xlu0 %v230, 64
    %v286 = vpop.permute.xlu0 %285
    %287 = vrot.lane.b32.xlu0 %v231, 64
    %v288 = vpop.permute.xlu0 %287
    %289 = vrot.lane.b32.xlu0 %v232, 64
    %v290 = vpop.permute.xlu0 %289
    %v299 = vmul.f32 %v217, %v276
    %v300 = vmul.f32 %v222, %v278
    %v301 = vmul.f32 %v217, %v280
    %v302 = vmul.f32 %v222, %v282
    %v303 = vmul.f32 %v217, %v284
    %v304 = vmul.f32 %v222, %v286
    %v305 = vmul.f32 %v217, %v288
    %v306 = vmul.f32 %v222, %v290
    %315 = vrot.lane.b32.xlu0 %v267, 96
    %v316 = vpop.permute.xlu0 %315
    %317 = vrot.lane.b32.xlu0 %v268, 96
    %v318 = vpop.permute.xlu0 %317
    %319 = vrot.lane.b32.xlu0 %v269, 96
    %v320 = vpop.permute.xlu0 %319
    %321 = vrot.lane.b32.xlu0 %v270, 96
    %v322 = vpop.permute.xlu0 %321
    %323 = vrot.lane.b32.xlu0 %v271, 96
    %v324 = vpop.permute.xlu0 %323
    %325 = vrot.lane.b32.xlu0 %v272, 96
    %v326 = vpop.permute.xlu0 %325
    %327 = vrot.lane.b32.xlu0 %v273, 96
    %v328 = vpop.permute.xlu0 %327
    %329 = vrot.lane.b32.xlu0 %v274, 96
    %v330 = vpop.permute.xlu0 %329
    %v332 = vsel %vm143, %v217, 0
    %v335 = vsel %vm143, %v222, 0
    %v337 = vsel %vm143, %v316, 0
    %v339 = vsel %vm143, %v318, 0
    %v341 = vsel %vm143, %v320, 0
    %v343 = vsel %vm143, %v322, 0
    %v345 = vsel %vm143, %v324, 0
    %v347 = vsel %vm143, %v326, 0
    %v349 = vsel %vm143, %v328, 0
    %v351 = vsel %vm143, %v330, 0
    %353 = vmatprep.subr.mxu0 0.0
    %354 = vmatpush1.xpose.msra.mxu0 %v337
    %355 = vmatprep.subr.mxu0 0.0
    %356 = vmatpush1.xpose.msra.mxu0 %v339
    %357 = vmatprep.subr.mxu0 0.0
    %358 = vmatpush1.xpose.msra.mxu0 %v341
    %359 = vmatprep.subr.mxu0 0.0
    %360 = vmatpush1.xpose.msra.mxu0 %v343
    %361 = vmatprep.subr.mxu0 0.0
    %362 = vmatpush1.xpose.msra.mxu0 %v345
    %363 = vmatprep.subr.mxu0 0.0
    %364 = vmatpush1.xpose.msra.mxu0 %v347
    %365 = vmatprep.subr.mxu0 0.0
    %366 = vmatpush1.xpose.msra.mxu0 %v349
    %367 = vmatprep.subr.mxu0 0.0
    %368 = vmatpush1.xpose.msra.mxu0 %v351
    %369 = vmatprep.subr.mxu0 0.0
    %370 = vmatpush1.xpose.msra.mxu0 0.0
    %371 = vmatprep.subr.mxu0 0.0
    %372 = vmatpush1.xpose.msra.mxu0 0.0
    %373 = vmatprep.subr.mxu0 0.0
    %374 = vmatpush1.xpose.msra.mxu0 0.0
    %375 = vmatprep.subr.mxu0 0.0
    %376 = vmatpush1.xpose.msra.mxu0 0.0
    %377 = vmatprep.subr.mxu0 0.0
    %378 = vmatpush1.xpose.msra.mxu0 0.0
    %379 = vmatprep.subr.mxu0 0.0
    %380 = vmatpush1.xpose.msra.mxu0 0.0
    %381 = vmatprep.subr.mxu0 0.0
    %382 = vmatpush1.xpose.msra.mxu0 0.0
    %383 = vmatprep.subr.mxu0 0.0
    %384 = vmatpush1.xpose.msra.mxu0 0.0
    %385 = vmatprep.subr.mxu0 0.0
    %386 = vmatpush1.xpose.msra.mxu0 0.0
    %387 = vmatprep.subr.mxu0 0.0
    %388 = vmatpush1.xpose.msra.mxu0 0.0
    %389 = vmatprep.subr.mxu0 0.0
    %390 = vmatpush1.xpose.msra.mxu0 0.0
    %391 = vmatprep.subr.mxu0 0.0
    %392 = vmatpush1.xpose.msra.mxu0 0.0
    %393 = vmatprep.subr.mxu0 0.0
    %394 = vmatpush1.xpose.msra.mxu0 0.0
    %395 = vmatprep.subr.mxu0 0.0
    %396 = vmatpush1.xpose.msra.mxu0 0.0
    %397 = vmatprep.subr.mxu0 0.0
    %398 = vmatpush1.xpose.msra.mxu0 0.0
    %399 = vmatprep.subr.mxu0 0.0
    %400 = vmatpush1.xpose.msra.mxu0 0.0
    %401 = vmatprep.subr.mxu0 0.0
    %402 = vmatpush1.xpose.msra.mxu0 0.0
    %403 = vmatprep.subr.mxu0 0.0
    %404 = vmatpush1.xpose.msra.mxu0 0.0
    %405 = vmatprep.subr.mxu0 0.0
    %406 = vmatpush1.xpose.msra.mxu0 0.0
    %407 = vmatprep.subr.mxu0 0.0
    %408 = vmatpush1.xpose.msra.mxu0 0.0
    %409 = vmatprep.subr.mxu0 0.0
    %410 = vmatpush1.xpose.msra.mxu0 0.0
    %411 = vmatprep.subr.mxu0 0.0
    %412 = vmatpush1.xpose.msra.mxu0 0.0
    %413 = vmatprep.subr.mxu0 0.0
    %414 = vmatpush1.xpose.msra.mxu0 0.0
    %415 = vmatprep.subr.mxu0 0.0
    %416 = vmatpush1.xpose.msra.mxu0 0.0
    %417 = vmatprep.mubr.f32.mxu0 0.0
    %418 = vmatmul.mubr.f32.gmra.mrb[0].mxu0 %v332
    %v419 = vpop.f32.mrb[0].mxu0
    %v420 = vadd.f32 %v233, %v419
    %v421 = vpop.f32.mrb[0].mxu0
    %422 = vmatprep.mubr.f32.mxu0 0.0
    %423 = vmatmul.mubr.f32.gmra.mrb[0].mxu0 %v335
    %v424 = vpop.f32.mrb[0].mxu0
    %v425 = vadd.f32 %v234, %v424
    %v426 = vpop.f32.mrb[0].mxu0
    %427 = vdwg.mxu0
    %v428 = vsel %vm51, %v420, -inf
    %429 = vmax.xlane.f32.xlu0 %v428
    %v430 = vpop.xlane.xlu0 %429
    %v431 = vsel %vm51, %v425, -inf
    %432 = vmax.xlane.f32.xlu0 %v431
    %v433 = vpop.xlane.xlu0 %432
    %v434 = vsub.f32 %v420, %v430
    %v435 = vsub.f32 %v425, %v433
    %v436 = vmul.f32 %v434, 1.442695
    %v437 = vpow.pop %v436
    %v438 = vmul.f32 %v435, 1.442695
    %v439 = vpow.pop %v438
    %448 = vrot.lane.b32.xlu0 %v299, 64
    %v449 = vpop.permute.xlu0 %448
    %450 = vrot.lane.b32.xlu0 %v300, 64
    %v451 = vpop.permute.xlu0 %450
    %452 = vrot.lane.b32.xlu0 %v301, 64
    %v453 = vpop.permute.xlu0 %452
    %454 = vrot.lane.b32.xlu0 %v302, 64
    %v455 = vpop.permute.xlu0 %454
    %456 = vrot.lane.b32.xlu0 %v303, 64
    %v457 = vpop.permute.xlu0 %456
    %458 = vrot.lane.b32.xlu0 %v304, 64
    %v459 = vpop.permute.xlu0 %458
    %460 = vrot.lane.b32.xlu0 %v305, 64
    %v461 = vpop.permute.xlu0 %460
    %462 = vrot.lane.b32.xlu0 %v306, 64
    %v463 = vpop.permute.xlu0 %462
    %v473 = vsel %vm51, %v437, 0
    %v476 = vsel %vm51, %v439, 0
    %478 = vmatprep.subr.mxu0 0.0
    %479 = vmatpush1.msra.mxu0 %v449
    %480 = vmatprep.subr.mxu0 0.0
    %481 = vmatpush1.msra.mxu0 %v451
    %482 = vmatprep.subr.mxu0 0.0
    %483 = vmatpush1.msra.mxu0 %v453
    %484 = vmatprep.subr.mxu0 0.0
    %485 = vmatpush1.msra.mxu0 %v455
    %486 = vmatprep.subr.mxu0 0.0
    %487 = vmatpush1.msra.mxu0 %v457
    %488 = vmatprep.subr.mxu0 0.0
    %489 = vmatpush1.msra.mxu0 %v459
    %490 = vmatprep.subr.mxu0 0.0
    %491 = vmatpush1.msra.mxu0 %v461
    %492 = vmatprep.subr.mxu0 0.0
    %493 = vmatpush1.msra.mxu0 %v463
    %494 = vmatprep.subr.mxu0 0.0
    %495 = vmatpush1.msra.mxu0 0.0
    %496 = vmatprep.subr.mxu0 0.0
    %497 = vmatpush1.msra.mxu0 0.0
    %498 = vmatprep.subr.mxu0 0.0
    %499 = vmatpush1.msra.mxu0 0.0
    %500 = vmatprep.subr.mxu0 0.0
    %501 = vmatpush1.msra.mxu0 0.0
    %502 = vmatprep.subr.mxu0 0.0
    %503 = vmatpush1.msra.mxu0 0.0
    %504 = vmatprep.subr.mxu0 0.0
    %505 = vmatpush1.msra.mxu0 0.0
    %506 = vmatprep.subr.mxu0 0.0
    %507 = vmatpush1.msra.mxu0 0.0
    %508 = vmatprep.subr.mxu0 0.0
    %509 = vmatpush1.msra.mxu0 0.0
    %510 = vmatprep.subr.mxu0 0.0
    %511 = vmatpush1.msra.mxu0 0.0
    %512 = vmatprep.subr.mxu0 0.0
    %513 = vmatpush1.msra.mxu0 0.0
    %514 = vmatprep.subr.mxu0 0.0
    %515 = vmatpush1.msra.mxu0 0.0
    %516 = vmatprep.subr.mxu0 0.0
    %517 = vmatpush1.msra.mxu0 0.0
    %518 = vmatprep.subr.mxu0 0.0
    %519 = vmatpush1.msra.mxu0 0.0
    %520 = vmatprep.subr.mxu0 0.0
    %521 = vmatpush1.msra.mxu0 0.0
    %522 = vmatprep.subr.mxu0 0.0
    %523 = vmatpush1.msra.mxu0 0.0
    %524 = vmatprep.subr.mxu0 0.0
    %525 = vmatpush1.msra.mxu0 0.0
    %526 = vmatprep.subr.mxu0 0.0
    %527 = vmatpush1.msra.mxu0 0.0
    %528 = vmatprep.subr.mxu0 0.0
    %529 = vmatpush1.msra.mxu0 0.0
    %530 = vmatprep.subr.mxu0 0.0
    %531 = vmatpush1.msra.mxu0 0.0
    %532 = vmatprep.subr.mxu0 0.0
    %533 = vmatpush1.msra.mxu0 0.0
    %534 = vmatprep.subr.mxu0 0.0
    %535 = vmatpush1.msra.mxu0 0.0
    %536 = vmatprep.subr.mxu0 0.0
    %537 = vmatpush1.msra.mxu0 0.0
    %538 = vmatprep.subr.mxu0 0.0
    %539 = vmatpush1.msra.mxu0 0.0
    %540 = vmatprep.subr.mxu0 0.0
    %541 = vmatpush1.msra.mxu0 0.0
    %542 = vmatprep.mubr.f32.mxu0 0.0
    %543 = vmatmul.mubr.f32.gmra.mrb[0].mxu0 %v473
    %v544 = vpop.f32.mrb[0].mxu0
    %v545 = vadd.f32 0.0, %v544
    %v546 = vpop.f32.mrb[0].mxu0
    %547 = vmatprep.mubr.f32.mxu0 0.0
    %548 = vmatmul.mubr.f32.gmra.mrb[0].mxu0 %v476
    %v549 = vpop.f32.mrb[0].mxu0
    %v550 = vadd.f32 0.0, %v549
    %v551 = vpop.f32.mrb[0].mxu0
    %552 = vdwg.mxu0
    %553 = vmatprep.subr.mxu0 0.0
    %554 = vmatpush1.msra.mxu0 %v225
    %555 = vmatprep.subr.mxu0 0.0
    %556 = vmatpush1.msra.mxu0 %v226
    %557 = vmatprep.subr.mxu0 0.0
    %558 = vmatpush1.msra.mxu0 %v227
    %559 = vmatprep.subr.mxu0 0.0
    %560 = vmatpush1.msra.mxu0 %v228
    %561 = vmatprep.subr.mxu0 0.0
    %562 = vmatpush1.msra.mxu0 %v229
    %563 = vmatprep.subr.mxu0 0.0
    %564 = vmatpush1.msra.mxu0 %v230
    %565 = vmatprep.subr.mxu0 0.0
    %566 = vmatpush1.msra.mxu0 %v231
    %567 = vmatprep.subr.mxu0 0.0
    %568 = vmatpush1.msra.mxu0 %v232
    %569 = vmatprep.subr.mxu0 0.0
    %570 = vmatpush1.msra.mxu0 0.0
    %571 = vmatprep.subr.mxu0 0.0
    %572 = vmatpush1.msra.mxu0 0.0
    %573 = vmatprep.subr.mxu0 0.0
    %574 = vmatpush1.msra.mxu0 0.0
    %575 = vmatprep.subr.mxu0 0.0
    %576 = vmatpush1.msra.mxu0 0.0
    %577 = vmatprep.subr.mxu0 0.0
    %578 = vmatpush1.msra.mxu0 0.0
    %579 = vmatprep.subr.mxu0 0.0
    %580 = vmatpush1.msra.mxu0 0.0
    %581 = vmatprep.subr.mxu0 0.0
    %582 = vmatpush1.msra.mxu0 0.0
    %583 = vmatprep.subr.mxu0 0.0
    %584 = vmatpush1.msra.mxu0 0.0
    %585 = vmatprep.subr.mxu0 0.0
    %586 = vmatpush1.msra.mxu0 0.0
    %587 = vmatprep.subr.mxu0 0.0
    %588 = vmatpush1.msra.mxu0 0.0
    %589 = vmatprep.subr.mxu0 0.0
    %590 = vmatpush1.msra.mxu0 0.0
    %591 = vmatprep.subr.mxu0 0.0
    %592 = vmatpush1.msra.mxu0 0.0
    %593 = vmatprep.subr.mxu0 0.0
    %594 = vmatpush1.msra.mxu0 0.0
    %595 = vmatprep.subr.mxu0 0.0
    %596 = vmatpush1.msra.mxu0 0.0
    %597 = vmatprep.subr.mxu0 0.0
    %598 = vmatpush1.msra.mxu0 0.0
    %599 = vmatprep.subr.mxu0 0.0
    %600 = vmatpush1.msra.mxu0 0.0
    %601 = vmatprep.subr.mxu0 0.0
    %602 = vmatpush1.msra.mxu0 0.0
    %603 = vmatprep.subr.mxu0 0.0
    %604 = vmatpush1.msra.mxu0 0.0
    %605 = vmatprep.subr.mxu0 0.0
    %606 = vmatpush1.msra.mxu0 0.0
    %607 = vmatprep.subr.mxu0 0.0
    %608 = vmatpush1.msra.mxu0 0.0
    %609 = vmatprep.subr.mxu0 0.0
    %610 = vmatpush1.msra.mxu0 0.0
    %611 = vmatprep.subr.mxu0 0.0
    %612 = vmatpush1.msra.mxu0 0.0
    %613 = vmatprep.subr.mxu0 0.0
    %614 = vmatpush1.msra.mxu0 0.0
    %615 = vmatprep.subr.mxu0 0.0
    %616 = vmatpush1.msra.mxu0 0.0
    %617 = vmatprep.mubr.f32.mxu0 0.0
    %618 = vmatmul.mubr.f32.gmra.mrb[0].mxu0 %v473
    %v619 = vpop.f32.mrb[0].mxu0
    %v620 = vadd.f32 0.0, %v619
    %v621 = vpop.f32.mrb[0].mxu0
    %622 = vmatprep.mubr.f32.mxu0 0.0
    %623 = vmatmul.mubr.f32.gmra.mrb[0].mxu0 %v476
    %v624 = vpop.f32.mrb[0].mxu0
    %v625 = vadd.f32 0.0, %v624
    %v626 = vpop.f32.mrb[0].mxu0
    %627 = vdwg.mxu0
    %v628 = vrcp.pop %v620
    %v629 = vrcp.pop %v625
    %v630 = vmul.f32 %v620, %v628
    %v631 = vmul.f32 %v625, %v629
    %v632 = vsub.f32 2.0, %v630
    %v633 = vsub.f32 2.0, %v631
    %v634 = vmul.f32 %v628, %v632
    %v635 = vmul.f32 %v629, %v633
    %v636 = vmul.f32 %v545, %v634
    %v637 = vmul.f32 %v550, %v635
    %v638 = vld [vmem:[#allocation2 + $0x60] sm:$0xff]
    %v639 = vld [vmem:[#allocation2 + $0x68] sm:$0xff]
    %v640 = vld [vmem:[#allocation2 + $0x70] sm:$0xff]
    %v641 = vld [vmem:[#allocation2 + $0x78] sm:$0xff]
    %v642 = vlaneseq
    %v643 = vshrl.u32 %v642, 7
    %v644 = vsub.s32 1, %v643
    %v645 = vrot.slane %v133, %v644
    %v647 = vsel %vm143, %v636, 0
    %v650 = vsel %vm143, %v637, 0
    %652 = vmatprep.subr.mxu0 0.0
    %653 = vmatpush1.msra.mxu0 %v638
    %654 = vmatprep.subr.mxu0 0.0
    %655 = vmatpush1.msra.mxu0 %v639
    %656 = vmatprep.subr.mxu0 0.0
    %657 = vmatpush1.msra.mxu0 %v640
    %658 = vmatprep.subr.mxu0 0.0
    %659 = vmatpush1.msra.mxu0 %v641
    %660 = vmatprep.subr.mxu0 0.0
    %661 = vmatpush1.msra.mxu0 0.0
    %662 = vmatprep.subr.mxu0 0.0
    %663 = vmatpush1.msra.mxu0 0.0
    %664 = vmatprep.subr.mxu0 0.0
    %665 = vmatpush1.msra.mxu0 0.0
    %666 = vmatprep.subr.mxu0 0.0
    %667 = vmatpush1.msra.mxu0 0.0
    %668 = vmatprep.subr.mxu0 0.0
    %669 = vmatpush1.msra.mxu0 0.0
    %670 = vmatprep.subr.mxu0 0.0
    %671 = vmatpush1.msra.mxu0 0.0
    %672 = vmatprep.subr.mxu0 0.0
    %673 = vmatpush1.msra.mxu0 0.0
    %674 = vmatprep.subr.mxu0 0.0
    %675 = vmatpush1.msra.mxu0 0.0
    %676 = vmatprep.subr.mxu0 0.0
    %677 = vmatpush1.msra.mxu0 0.0
    %678 = vmatprep.subr.mxu0 0.0
    %679 = vmatpush1.msra.mxu0 0.0
    %680 = vmatprep.subr.mxu0 0.0
    %681 = vmatpush1.msra.mxu0 0.0
    %682 = vmatprep.subr.mxu0 0.0
    %683 = vmatpush1.msra.mxu0 0.0
    %684 = vmatprep.subr.mxu0 0.0
    %685 = vmatpush1.msra.mxu0 0.0
    %686 = vmatprep.subr.mxu0 0.0
    %687 = vmatpush1.msra.mxu0 0.0
    %688 = vmatprep.subr.mxu0 0.0
    %689 = vmatpush1.msra.mxu0 0.0
    %690 = vmatprep.subr.mxu0 0.0
    %691 = vmatpush1.msra.mxu0 0.0
    %692 = vmatprep.subr.mxu0 0.0
    %693 = vmatpush1.msra.mxu0 0.0
    %694 = vmatprep.subr.mxu0 0.0
    %695 = vmatpush1.msra.mxu0 0.0
    %696 = vmatprep.subr.mxu0 0.0
    %697 = vmatpush1.msra.mxu0 0.0
    %698 = vmatprep.subr.mxu0 0.0
    %699 = vmatpush1.msra.mxu0 0.0
    %700 = vmatprep.subr.mxu0 0.0
    %701 = vmatpush1.msra.mxu0 0.0
    %702 = vmatprep.subr.mxu0 0.0
    %703 = vmatpush1.msra.mxu0 0.0
    %704 = vmatprep.subr.mxu0 0.0
    %705 = vmatpush1.msra.mxu0 0.0
    %706 = vmatprep.subr.mxu0 0.0
    %707 = vmatpush1.msra.mxu0 0.0
    %708 = vmatprep.subr.mxu0 0.0
    %709 = vmatpush1.msra.mxu0 0.0
    %710 = vmatprep.subr.mxu0 0.0
    %711 = vmatpush1.msra.mxu0 0.0
    %712 = vmatprep.subr.mxu0 0.0
    %713 = vmatpush1.msra.mxu0 0.0
    %714 = vmatprep.subr.mxu0 0.0
    %715 = vmatpush1.msra.mxu0 0.0
    %716 = vmatprep.mubr.f32.mxu0 0.0
    %717 = vmatmul.mubr.f32.gmra.mrb[0].mxu0 %v647
    %v718 = vpop.f32.mrb[0].mxu0
    %v719 = vadd.f32 %v645, %v718
    %v720 = vpop.f32.mrb[0].mxu0
    %721 = vmatprep.mubr.f32.mxu0 0.0
    %722 = vmatmul.mubr.f32.gmra.mrb[0].mxu0 %v650
    %v723 = vpop.f32.mrb[0].mxu0
    %v724 = vadd.f32 %v645, %v723
    %v725 = vpop.f32.mrb[0].mxu0
    %726 = vdwg.mxu0
    %v727 = vadd.f32 %v125, %v719
    %v728 = vadd.f32 %v130, %v724
    %v729 = vsel %vm143, %v727, 0.0
    %730 = vadd.xlane.f32.xlu0 %v729
    %v731 = vpop.xlane.xlu0 %730
    %v732 = vsel %vm143, %v728, 0.0
    %733 = vadd.xlane.f32.xlu0 %v732
    %v734 = vpop.xlane.xlu0 %733
    %v735 = vrcp.pop 32.0
    %v736 = vmul.f32 %v731, %v735
    %v737 = vmul.f32 %v734, %v735
    %v738 = vsub.f32 %v727, %v736
    %v739 = vsub.f32 %v728, %v737
    %v740 = vmul.f32 %v738, %v738
    %v741 = vmul.f32 %v739, %v739
    %v742 = vsel %vm143, %v740, 0.0
    %743 = vadd.xlane.f32.xlu0 %v742
    %v744 = vpop.xlane.xlu0 %743
    %v745 = vsel %vm143, %v741, 0.0
    %746 = vadd.xlane.f32.xlu0 %v745
    %v747 = vpop.xlane.xlu0 %746
    %v748 = vmul.f32 %v744, %v735
    %v749 = vmul.f32 %v747, %v735
    %v750 = vadd.f32 %v748, 1e-05
    %v751 = vadd.f32 %v749, 1e-05
    %v752 = vrsqrt.pop %v750
    %v753 = vrsqrt.pop %v751
    %v754 = vmul.f32 %v738, %v752
    %v755 = vmul.f32 %v739, %v753
    %v756 = vlaneseq
    %v757 = vshrl.u32 %v756, 7
    %v758 = vsub.s32 2, %v757
    %v759 = vrot.slane %v133, %v758
    %v760 = vmul.f32 %v754, %v759
    %v761 = vmul.f32 %v755, %v759
    %v762 = vlaneseq
    %v763 = vshrl.u32 %v762, 7
    %v764 = vsub.s32 3, %v763
    %v765 = vrot.slane %v133, %v764
    %v766 = vadd.f32 %v760, %v765
    %v767 = vadd.f32 %v761, %v765
    %v768 = vld [vmem:[#allocation2 + $0x20] sm:$0xff]
    %v769 = vld [vmem:[#allocation2 + $0x28] sm:$0xff]
    %v770 = vld [vmem:[#allocation2 + $0x30] sm:$0xff]
    %v771 = vld [vmem:[#allocation2 + $0x38] sm:$0xff]
    %v772 = vlaneseq
    %v773 = vshrl.u32 %v772, 7
    %v774 = vsub.s32 4, %v773
    %v775 = vrot.slane %v133, %v774
    %v777 = vsel %vm143, %v766, 0
    %v780 = vsel %vm143, %v767, 0
    %782 = vmatprep.subr.mxu0 0.0
    %783 = vmatpush1.msra.mxu0 %v768
    %784 = vmatprep.subr.mxu0 0.0
    %785 = vmatpush1.msra.mxu0 %v769
    %786 = vmatprep.subr.mxu0 0.0
    %787 = vmatpush1.msra.mxu0 %v770
    %788 = vmatprep.subr.mxu0 0.0
    %789 = vmatpush1.msra.mxu0 %v771
    %790 = vmatprep.subr.mxu0 0.0
    %791 = vmatpush1.msra.mxu0 0.0
    %792 = vmatprep.subr.mxu0 0.0
    %793 = vmatpush1.msra.mxu0 0.0
    %794 = vmatprep.subr.mxu0 0.0
    %795 = vmatpush1.msra.mxu0 0.0
    %796 = vmatprep.subr.mxu0 0.0
    %797 = vmatpush1.msra.mxu0 0.0
    %798 = vmatprep.subr.mxu0 0.0
    %799 = vmatpush1.msra.mxu0 0.0
    %800 = vmatprep.subr.mxu0 0.0
    %801 = vmatpush1.msra.mxu0 0.0
    %802 = vmatprep.subr.mxu0 0.0
    %803 = vmatpush1.msra.mxu0 0.0
    %804 = vmatprep.subr.mxu0 0.0
    %805 = vmatpush1.msra.mxu0 0.0
    %806 = vmatprep.subr.mxu0 0.0
    %807 = vmatpush1.msra.mxu0 0.0
    %808 = vmatprep.subr.mxu0 0.0
    %809 = vmatpush1.msra.mxu0 0.0
    %810 = vmatprep.subr.mxu0 0.0
    %811 = vmatpush1.msra.mxu0 0.0
    %812 = vmatprep.subr.mxu0 0.0
    %813 = vmatpush1.msra.mxu0 0.0
    %814 = vmatprep.subr.mxu0 0.0
    %815 = vmatpush1.msra.mxu0 0.0
    %816 = vmatprep.subr.mxu0 0.0
    %817 = vmatpush1.msra.mxu0 0.0
    %818 = vmatprep.subr.mxu0 0.0
    %819 = vmatpush1.msra.mxu0 0.0
    %820 = vmatprep.subr.mxu0 0.0
    %821 = vmatpush1.msra.mxu0 0.0
    %822 = vmatprep.subr.mxu0 0.0
    %823 = vmatpush1.msra.mxu0 0.0
    %824 = vmatprep.subr.mxu0 0.0
    %825 = vmatpush1.msra.mxu0 0.0
    %826 = vmatprep.subr.mxu0 0.0
    %827 = vmatpush1.msra.mxu0 0.0
    %828 = vmatprep.subr.mxu0 0.0
    %829 = vmatpush1.msra.mxu0 0.0
    %830 = vmatprep.subr.mxu0 0.0
    %831 = vmatpush1.msra.mxu0 0.0
    %832 = vmatprep.subr.mxu0 0.0
    %833 = vmatpush1.msra.mxu0 0.0
    %834 = vmatprep.subr.mxu0 0.0
    %835 = vmatpush1.msra.mxu0 0.0
    %836 = vmatprep.subr.mxu0 0.0
    %837 = vmatpush1.msra.mxu0 0.0
    %838 = vmatprep.subr.mxu0 0.0
    %839 = vmatpush1.msra.mxu0 0.0
    %840 = vmatprep.subr.mxu0 0.0
    %841 = vmatpush1.msra.mxu0 0.0
    %842 = vmatprep.subr.mxu0 0.0
    %843 = vmatpush1.msra.mxu0 0.0
    %844 = vmatprep.subr.mxu0 0.0
    %845 = vmatpush1.msra.mxu0 0.0
    %846 = vmatprep.mubr.f32.mxu0 0.0
    %847 = vmatmul.mubr.f32.gmra.mrb[0].mxu0 %v777
    %v848 = vpop.f32.mrb[0].mxu0
    %v849 = vadd.f32 %v775, %v848
    %v850 = vpop.f32.mrb[0].mxu0
    %851 = vmatprep.mubr.f32.mxu0 0.0
    %852 = vmatmul.mubr.f32.gmra.mrb[0].mxu0 %v780
    %v853 = vpop.f32.mrb[0].mxu0
    %v854 = vadd.f32 %v775, %v853
    %v855 = vpop.f32.mrb[0].mxu0
    %856 = vdwg.mxu0
    %v857 = vmax.f32 %v849, 0.0
    %v858 = vmax.f32 %v854, 0.0
    %v859 = vld [vmem:[#allocation2 + $0x40] sm:$0xff]
    %v860 = vld [vmem:[#allocation2 + $0x48] sm:$0xff]
    %v861 = vld [vmem:[#allocation2 + $0x50] sm:$0xff]
    %v862 = vld [vmem:[#allocation2 + $0x58] sm:$0xff]
    %v863 = vlaneseq
    %v864 = vshrl.u32 %v863, 7
    %v865 = vsub.s32 5, %v864
    %v866 = vrot.slane %v133, %v865
    %867 = vmatprep.subr.mxu0 0.0
    %868 = vmatpush1.xpose.msra.mxu0 %v859
    %869 = vmatprep.subr.mxu0 0.0
    %870 = vmatpush1.xpose.msra.mxu0 %v860
    %871 = vmatprep.subr.mxu0 0.0
    %872 = vmatpush1.xpose.msra.mxu0 %v861
    %873 = vmatprep.subr.mxu0 0.0
    %874 = vmatpush1.xpose.msra.mxu0 %v862
    %875 = vmatprep.subr.mxu0 0.0
    %876 = vmatpush1.xpose.msra.mxu0 0.0
    %877 = vmatprep.subr.mxu0 0.0
    %878 = vmatpush1.xpose.msra.mxu0 0.0
    %879 = vmatprep.subr.mxu0 0.0
    %880 = vmatpush1.xpose.msra.mxu0 0.0
    %881 = vmatprep.subr.mxu0 0.0
    %882 = vmatpush1.xpose.msra.mxu0 0.0
    %883 = vmatprep.subr.mxu0 0.0
    %884 = vmatpush1.xpose.msra.mxu0 0.0
    %885 = vmatprep.subr.mxu0 0.0
    %886 = vmatpush1.xpose.msra.mxu0 0.0
    %887 = vmatprep.subr.mxu0 0.0
    %888 = vmatpush1.xpose.msra.mxu0 0.0
    %889 = vmatprep.subr.mxu0 0.0
    %890 = vmatpush1.xpose.msra.mxu0 0.0
    %891 = vmatprep.subr.mxu0 0.0
    %892 = vmatpush1.xpose.msra.mxu0 0.0
    %893 = vmatprep.subr.mxu0 0.0
    %894 = vmatpush1.xpose.msra.mxu0 0.0
    %895 = vmatprep.subr.mxu0 0.0
    %896 = vmatpush1.xpose.msra.mxu0 0.0
    %897 = vmatprep.subr.mxu0 0.0
    %898 = vmatpush1.xpose.msra.mxu0 0.0
    %899 = vmatprep.subr.mxu0 0.0
    %900 = vmatpush1.xpose.msra.mxu0 0.0
    %901 = vmatprep.subr.mxu0 0.0
    %902 = vmatpush1.xpose.msra.mxu0 0.0
    %903 = vmatprep.subr.mxu0 0.0
    %904 = vmatpush1.xpose.msra.mxu0 0.0
    %905 = vmatprep.subr.mxu0 0.0
    %906 = vmatpush1.xpose.msra.mxu0 0.0
    %907 = vmatprep.subr.mxu0 0.0
    %908 = vmatpush1.xpose.msra.mxu0 0.0
    %909 = vmatprep.subr.mxu0 0.0
    %910 = vmatpush1.xpose.msra.mxu0 0.0
    %911 = vmatprep.subr.mxu0 0.0
    %912 = vmatpush1.xpose.msra.mxu0 0.0
    %913 = vmatprep.subr.mxu0 0.0
    %914 = vmatpush1.xpose.msra.mxu0 0.0
    %915 = vmatprep.subr.mxu0 0.0
    %916 = vmatpush1.xpose.msra.mxu0 0.0
    %917 = vmatprep.subr.mxu0 0.0
    %918 = vmatpush1.xpose.msra.mxu0 0.0
    %919 = vmatprep.subr.mxu0 0.0
    %920 = vmatpush1.xpose.msra.mxu0 0.0
    %921 = vmatprep.subr.mxu0 0.0
    %922 = vmatpush1.xpose.msra.mxu0 0.0
    %923 = vmatprep.subr.mxu0 0.0
    %924 = vmatpush1.xpose.msra.mxu0 0.0
    %925 = vmatprep.subr.mxu0 0.0
    %926 = vmatpush1.xpose.msra.mxu0 0.0
    %927 = vmatprep.subr.mxu0 0.0
    %928 = vmatpush1.xpose.msra.mxu0 0.0
    %929 = vmatprep.subr.mxu0 0.0
    %930 = vmatpush1.xpose.msra.mxu0 0.0
    %931 = vmatprep.mubr.f32.mxu0 0.0
    %932 = vmatmul.mubr.f32.gmra.mrb[0].mxu0 %v857
    %v933 = vpop.f32.mrb[0].mxu0
    %v934 = vadd.f32 %v866, %v933
    %v935 = vpop.f32.mrb[0].mxu0
    %936 = vmatprep.mubr.f32.mxu0 0.0
    %937 = vmatmul.mubr.f32.gmra.mrb[0].mxu0 %v858
    %v938 = vpop.f32.mrb[0].mxu0
    %v939 = vadd.f32 %v866, %v938
    %v940 = vpop.f32.mrb[0].mxu0
    %941 = vdwg.mxu0
    %v942 = vadd.f32 %v766, %v934
    %v943 = vadd.f32 %v767, %v939
    %v944 = vsel %vm143, %v942, 0.0
    %945 = vadd.xlane.f32.xlu0 %v944
    %v946 = vpop.xlane.xlu0 %945
    %v947 = vsel %vm143, %v943, 0.0
    %948 = vadd.xlane.f32.xlu0 %v947
    %v949 = vpop.xlane.xlu0 %948
    %v950 = vmul.f32 %v946, %v735
    %v951 = vmul.f32 %v949, %v735
    %v952 = vsub.f32 %v942, %v950
    %v953 = vsub.f32 %v943, %v951
    %v954 = vmul.f32 %v952, %v952
    %v955 = vmul.f32 %v953, %v953
    %v956 = vsel %vm143, %v954, 0.0
    %957 = vadd.xlane.f32.xlu0 %v956
    %v958 = vpop.xlane.xlu0 %957
    %v959 = vsel %vm143, %v955, 0.0
    %960 = vadd.xlane.f32.xlu0 %v959
    %v961 = vpop.xlane.xlu0 %960
    %v962 = vmul.f32 %v958, %v735
    %v963 = vmul.f32 %v961, %v735
    %v964 = vadd.f32 %v962, 1e-05
    %v965 = vadd.f32 %v963, 1e-05
    %v966 = vrsqrt.pop %v964
    %v967 = vrsqrt.pop %v965
    %v968 = vmul.f32 %v952, %v966
    %v969 = vmul.f32 %v953, %v967
    %v970 = vlaneseq
    %v971 = vshrl.u32 %v970, 7
    %v972 = vsub.s32 6, %v971
    %v973 = vrot.slane %v133, %v972
    %v974 = vmul.f32 %v968, %v973
    %v975 = vmul.f32 %v969, %v973
    %v976 = vlaneseq
    %v977 = vshrl.u32 %v976, 7
    %v978 = vsub.s32 7, %v977
    %v979 = vrot.slane %v133, %v978
    %v980 = vadd.f32 %v974, %v979
    %v981 = vadd.f32 %v975, %v979
    %v982 = vld [vmem:[#allocation2 + $0x80] sm:$0xff]
    %v983 = vld [vmem:[#allocation2 + $0x88] sm:$0xff]
    %v984 = vld [vmem:[#allocation2 + $0x90] sm:$0xff]
    %v985 = vld [vmem:[#allocation2 + $0x98] sm:$0xff]
    %v986 = vlaneseq
    %v987 = vshrl.u32 %v986, 7
    %v988 = vsub.s32 0, %v987
    %v989 = vrot.slane %v134, %v988
    %v991 = vsel %vm143, %v980, 0
    %v994 = vsel %vm143, %v981, 0
    %996 = vmatprep.subr.mxu0 0.0
    %997 = vmatpush1.msra.mxu0 %v982
    %998 = vmatprep.subr.mxu0 0.0
    %999 = vmatpush1.msra.mxu0 %v983
    %1000 = vmatprep.subr.mxu0 0.0
    %1001 = vmatpush1.msra.mxu0 %v984
    %1002 = vmatprep.subr.mxu0 0.0
    %1003 = vmatpush1.msra.mxu0 %v985
    %1004 = vmatprep.subr.mxu0 0.0
    %1005 = vmatpush1.msra.mxu0 0.0
    %1006 = vmatprep.subr.mxu0 0.0
    %1007 = vmatpush1.msra.mxu0 0.0
    %1008 = vmatprep.subr.mxu0 0.0
    %1009 = vmatpush1.msra.mxu0 0.0
    %1010 = vmatprep.subr.mxu0 0.0
    %1011 = vmatpush1.msra.mxu0 0.0
    %1012 = vmatprep.subr.mxu0 0.0
    %1013 = vmatpush1.msra.mxu0 0.0
    %1014 = vmatprep.subr.mxu0 0.0
    %1015 = vmatpush1.msra.mxu0 0.0
    %1016 = vmatprep.subr.mxu0 0.0
    %1017 = vmatpush1.msra.mxu0 0.0
    %1018 = vmatprep.subr.mxu0 0.0
    %1019 = vmatpush1.msra.mxu0 0.0
    %1020 = vmatprep.subr.mxu0 0.0
    %1021 = vmatpush1.msra.mxu0 0.0
    %1022 = vmatprep.subr.mxu0 0.0
    %1023 = vmatpush1.msra.mxu0 0.0
    %1024 = vmatprep.subr.mxu0 0.0
    %1025 = vmatpush1.msra.mxu0 0.0
    %1026 = vmatprep.subr.mxu0 0.0
    %1027 = vmatpush1.msra.mxu0 0.0
    %1028 = vmatprep.subr.mxu0 0.0
    %1029 = vmatpush1.msra.mxu0 0.0
    %1030 = vmatprep.subr.mxu0 0.0
    %1031 = vmatpush1.msra.mxu0 0.0
    %1032 = vmatprep.subr.mxu0 0.0
    %1033 = vmatpush1.msra.mxu0 0.0
    %1034 = vmatprep.subr.mxu0 0.0
    %1035 = vmatpush1.msra.mxu0 0.0
    %1036 = vmatprep.subr.mxu0 0.0
    %1037 = vmatpush1.msra.mxu0 0.0
    %1038 = vmatprep.subr.mxu0 0.0
    %1039 = vmatpush1.msra.mxu0 0.0
    %1040 = vmatprep.subr.mxu0 0.0
    %1041 = vmatpush1.msra.mxu0 0.0
    %1042 = vmatprep.subr.mxu0 0.0
    %1043 = vmatpush1.msra.mxu0 0.0
    %1044 = vmatprep.subr.mxu0 0.0
    %1045 = vmatpush1.msra.mxu0 0.0
    %1046 = vmatprep.subr.mxu0 0.0
    %1047 = vmatpush1.msra.mxu0 0.0
    %1048 = vmatprep.subr.mxu0 0.0
    %1049 = vmatpush1.msra.mxu0 0.0
    %1050 = vmatprep.subr.mxu0 0.0
    %1051 = vmatpush1.msra.mxu0 0.0
    %1052 = vmatprep.subr.mxu0 0.0
    %1053 = vmatpush1.msra.mxu0 0.0
    %1054 = vmatprep.subr.mxu0 0.0
    %1055 = vmatpush1.msra.mxu0 0.0
    %1056 = vmatprep.subr.mxu0 0.0
    %1057 = vmatpush1.msra.mxu0 0.0
    %1058 = vmatprep.subr.mxu0 0.0
    %1059 = vmatpush1.msra.mxu0 0.0
    %1060 = vmatprep.mubr.f32.mxu0 0.0
    %1061 = vmatmul.mubr.f32.gmra.mrb[0].mxu0 %v991
    %v1062 = vpop.f32.mrb[0].mxu0
    %v1063 = vadd.f32 %v989, %v1062
    %v1064 = vpop.f32.mrb[0].mxu0
    %1065 = vmatprep.mubr.f32.mxu0 0.0
    %1066 = vmatmul.mubr.f32.gmra.mrb[0].mxu0 %v994
    %v1067 = vpop.f32.mrb[0].mxu0
    %v1068 = vadd.f32 %v989, %v1067
    %v1069 = vpop.f32.mrb[0].mxu0
    %1070 = vdwg.mxu0
    %1071 = vst [vmem:[%s2] sm:$0xff] %v1063
    %1072 = vst [vmem:[%s2 + $0x8] sm:$0xff] %v1068
    // Predicated region
    $region14: #{custom_transformer.1} parent=1 // pred_check
      _
    $region15: #{custom_transformer.1} parent=1 // pred_check_branch
      %1074 = sbr.rel (0) target = $region17
    $region16: #{custom_transformer.1} parent=1 // pred_region
      _
    $region17: #{custom_transformer.1} parent=1 // pred_fallthru
      _
    // Predicated region
    $region18: #{custom_transformer.1} parent=1 // pred_check
      _
    $region19: #{custom_transformer.1} parent=1 // pred_check_branch
      %1076 = sbr.rel (0) target = $region21
    $region20: #{custom_transformer.1} parent=1 // pred_region
      _
    $region21: #{custom_transformer.1} parent=1 // pred_fallthru
      _
    %1077 = vsyncpa [#allocation3], 1

</llo_original>
